<compile_context>
chip_gen: v6e
topology: v6e:2x2x1
jax: 0.10.0
libtpu: 0.0.40
codegen_flags: <defaults>
</compile_context>

<pallas_src>
import functools

import numpy as np
import jax
import jax.numpy as jnp
from jax.experimental import pallas as pl
from jax.experimental.pallas import tpu as pltpu


def _get_elements_kernel(logits_ref, lines_ref, wh_ref, out_ref, *,
                         num_classes, num_coords, out_rows):
    C = num_classes
    D = num_coords

    logits = logits_ref[...]                               # (C, Qp) f32
    lines = lines_ref[...]                                 # (D, Qp) f32
    Qp = logits.shape[1]

    # ---- softmax statistics over the class axis (sublane axis) ----
    m = jnp.max(logits, axis=0, keepdims=True)             # (1, Qp)
    e = jnp.exp(logits - m)                                # (C, Qp)
    denom = jnp.sum(e, axis=0, keepdims=True)              # (1, Qp)

    # ---- argmax over classes on the raw logits (first occurrence) ----
    cls_idx = jax.lax.broadcasted_iota(jnp.int32, (C, Qp), 0)
    labels = jnp.min(jnp.where(logits == m, cls_idx, C),
                     axis=0, keepdims=True).astype(jnp.int32)     # (1, Qp)

    # ---- tgt_scores = 1 - P(background); exact division (EUP/VPU slack) ----
    # Background class is assumed to be the LAST logit (index C-1), matching
    # prob[..., -1] in the reference module.
    tgt = 1.0 - e[C - 1:C, :] / denom                      # (1, Qp)

    # ---- scale curve points to image size: x * w, y * h ----
    w = wh_ref[0]
    h = wh_ref[1]
    coord_idx = jax.lax.broadcasted_iota(jnp.int32, (D, Qp), 0)
    scale = jnp.where((coord_idx % 2) == 0, w, h)          # [w,h,w,h,...] rows
    boxes = lines * scale                                  # (D, Qp)

    # ---- one whole-tile store: boxes | scores | labels(bitcast) | padding ----
    labels_f32 = pltpu.bitcast(labels, jnp.float32)        # (1, Qp)
    pad_rows = out_rows - (D + 2)
    pad = jnp.zeros((pad_rows, Qp), jnp.float32)
    out_ref[...] = jnp.concatenate([boxes, tgt, labels_f32, pad], axis=0)


@jax.jit
def get_elements_from_curves(pred_logits, pred_lines, target_sizes):
    """JAX/Pallas equivalent of the tensor part of GetElements.forward_from_curves.

    Args:
      pred_logits:  (1, Q, C)      float32   (last class = background)
      pred_lines:   (1, Q, 2*npt)  float32, normalized [x, y] pairs
      target_sizes: (1, 2)         float32, (w, h)  -- matches `im_wh`.

    Returns:
      Lane-dense f32 slab of shape (ceil((D+2)/8)*8, Qp) where
        rows [0, D)  : pred_boxes  (coords on sublanes, queries on lanes)
        row  D       : tgt_scores
        row  D+1     : out_labels, int32 bitcast to f32
      Unpack with `unpack_outputs_host` (the consumers are CPU post-processing,
      so the back-transpose is done on host, not as an extra device op).
    """
    assert pred_logits.shape[0] == 1, "batchsize != 1"
    assert target_sizes.shape[1] == 2

    _, Q, C = pred_logits.shape
    D = pred_lines.shape[-1]

    # Lane-dense layout: queries on the lane (last) axis, padded to 128.
    Qp = ((Q + 127) // 128) * 128
    Rout = ((D + 2 + 7) // 8) * 8            # output sublanes padded to 8

    logits_t = jnp.transpose(pred_logits[0]).astype(jnp.float32)   # (C, Q)
    lines_t = jnp.transpose(pred_lines[0]).astype(jnp.float32)     # (D, Q)
    if Qp != Q:
        logits_t = jnp.pad(logits_t, ((0, 0), (0, Qp - Q)))
        lines_t = jnp.pad(lines_t, ((0, 0), (0, Qp - Q)))

    wh = target_sizes[0].astype(jnp.float32)                       # (2,) = (w, h)

    kernel = functools.partial(
        _get_elements_kernel, num_classes=C, num_coords=D, out_rows=Rout)

    slab = pl.pallas_call(
        kernel,
        out_shape=jax.ShapeDtypeStruct((Rout, Qp), jnp.float32),
        in_specs=[
            pl.BlockSpec(memory_space=pltpu.MemorySpace.VMEM),     # logits_t
            pl.BlockSpec(memory_space=pltpu.MemorySpace.VMEM),     # lines_t
            pl.BlockSpec(memory_space=pltpu.MemorySpace.SMEM),     # (w, h)
        ],
        out_specs=pl.BlockSpec(memory_space=pltpu.MemorySpace.VMEM),
    )(logits_t, lines_t, wh)
    return slab


def unpack_outputs_host(slab, Q, D):
    """Host-side unpack (results feed cv2/scipy post-processing anyway)."""
    slab_np = np.asarray(jax.device_get(slab))                     # (Rout, Qp)
    pred_boxes = slab_np[:D, :Q].T[None, :, :]                     # (1, Q, D)
    tgt_scores = slab_np[D, :Q][None, :]                           # (1, Q)
    out_labels = np.ascontiguousarray(slab_np[D + 1, :Q]).view(np.int32)[None, :]
    # TODO(synk): cv2 polylines/dilate, skeletonize, split_skeleton,
    # connect_edges and scipy linear_sum_assignment (branch parsing ->
    # out_sequences) are CPU post-processing with no Pallas equivalent.
    return tgt_scores, out_labels, pred_boxes


def _reference(pred_logits, pred_lines, target_sizes):
    prob = jax.nn.softmax(pred_logits, axis=-1)
    labels = jnp.argmax(prob, axis=-1).astype(jnp.int32)
    tgt_scores = 1.0 - prob[..., -1]
    npt = pred_lines.shape[-1] // 2
    pts = pred_lines.reshape(pred_lines.shape[0], pred_lines.shape[1], npt, 2)
    boxes = (pts * target_sizes[:, None, None, :]).reshape(pred_lines.shape)
    return tgt_scores, labels, boxes


if __name__ == "__main__":
    key = jax.random.PRNGKey(0)
    k1, k2 = jax.random.split(key)

    Q, C, NPT = 64, 8, 4              # queries, classes (last = background), pts/curve
    D = 2 * NPT
    pred_logits = jax.random.normal(k1, (1, Q, C), dtype=jnp.float32)
    pred_lines = jax.random.uniform(k2, (1, Q, D), dtype=jnp.float32)
    target_sizes = jnp.array([[128.0, 96.0]], dtype=jnp.float32)   # (w, h)

    slab = get_elements_from_curves(pred_logits, pred_lines, target_sizes)
    jax.block_until_ready(slab)

    tgt_scores, out_labels, pred_boxes = unpack_outputs_host(slab, Q, D)

    # check against pure-JAX reference
    r_scores, r_labels, r_boxes = _reference(pred_logits, pred_lines, target_sizes)
    assert tgt_scores.shape == (1, Q)
    assert out_labels.shape == (1, Q)
    assert pred_boxes.shape == (1, Q, D)
    assert np.allclose(tgt_scores, np.asarray(r_scores), atol=1e-5)
    assert np.array_equal(out_labels, np.asarray(r_labels))
    assert np.allclose(pred_boxes, np.asarray(r_boxes), atol=1e-4)

    print("KERNEL_OK")
</pallas_src>

<mosaic_0001>
module attributes {stable_mosaic.version = 11 : i64} {
  func.func @_get_elements_kernel(%arg0: memref<8x128xf32, #tpu.memory_space<vmem>>, %arg1: memref<8x128xf32, #tpu.memory_space<vmem>>, %arg2: memref<2xf32, #tpu.memory_space<smem>>, %arg3: memref<16x128xf32, #tpu.memory_space<vmem>>) attributes {dimension_semantics = [], scalar_prefetch = 0 : i64, scratch_operands = 0 : i64, tpu.core_type = #tpu.core_type<tc>} {
    %c0 = arith.constant 0 : index
    %c0_0 = arith.constant 0 : index
    %0 = vector.load %arg0[%c0, %c0_0] : memref<8x128xf32, #tpu.memory_space<vmem>>, vector<8x128xf32>
    %c0_1 = arith.constant 0 : index
    %c0_2 = arith.constant 0 : index
    %1 = vector.load %arg1[%c0_1, %c0_2] : memref<8x128xf32, #tpu.memory_space<vmem>>, vector<8x128xf32>
    %cst = arith.constant dense<0xFF800000> : vector<128xf32>
    %2 = vector.multi_reduction <maximumf>, %0, %cst [0] : vector<8x128xf32> to vector<128xf32>
    %3 = vector.shape_cast %2 : vector<128xf32> to vector<1x128xf32>
    %4 = vector.broadcast %3 : vector<1x128xf32> to vector<8x128xf32>
    %5 = arith.subf %0, %4 : vector<8x128xf32>
    %6 = math.exp %5 : vector<8x128xf32>
    %cst_3 = arith.constant dense<0.000000e+00> : vector<128xf32>
    %7 = vector.multi_reduction <add>, %6, %cst_3 [0] : vector<8x128xf32> to vector<128xf32>
    %8 = vector.shape_cast %7 : vector<128xf32> to vector<1x128xf32>
    %9 = tpu.iota {dimensions = array<i32: 0>} : vector<8x128xi32>
    %10 = vector.broadcast %3 : vector<1x128xf32> to vector<8x128xf32>
    %11 = arith.cmpf oeq, %0, %10 : vector<8x128xf32>
    %c8_i32 = arith.constant 8 : i32
    %12 = vector.broadcast %c8_i32 : i32 to vector<8x128xi32>
    %13 = arith.select %11, %9, %12 : vector<8x128xi1>, vector<8x128xi32>
    %cst_4 = arith.constant dense<2147483647> : vector<128xi32>
    %14 = vector.multi_reduction <minsi>, %13, %cst_4 [0] : vector<8x128xi32> to vector<128xi32>
    %15 = vector.shape_cast %14 : vector<128xi32> to vector<1x128xi32>
    %16 = vector.extract_strided_slice %6 {offsets = [7, 0], sizes = [1, 128], strides = [1, 1]} : vector<8x128xf32> to vector<1x128xf32>
    %17 = arith.divf %16, %8 : vector<1x128xf32>
    %cst_5 = arith.constant 1.000000e+00 : f32
    %18 = vector.broadcast %cst_5 : f32 to vector<1x128xf32>
    %19 = arith.subf %18, %17 : vector<1x128xf32>
    %c0_6 = arith.constant 0 : index
    %20 = memref.load %arg2[%c0_6] : memref<2xf32, #tpu.memory_space<smem>>
    %c1 = arith.constant 1 : index
    %21 = memref.load %arg2[%c1] : memref<2xf32, #tpu.memory_space<smem>>
    %22 = tpu.iota {dimensions = array<i32: 0>} : vector<8x128xi32>
    %c2_i32 = arith.constant 2 : i32
    %c0_i32 = arith.constant 0 : i32
    %23 = arith.cmpi eq, %c2_i32, %c0_i32 : i32
    %c1_i32 = arith.constant 1 : i32
    %24 = arith.select %23, %c1_i32, %c2_i32 : i32
    %25 = vector.broadcast %24 : i32 to vector<8x128xi32>
    %26 = arith.remsi %22, %25 : vector<8x128xi32>
    %c0_i32_7 = arith.constant 0 : i32
    %27 = vector.broadcast %c0_i32_7 : i32 to vector<8x128xi32>
    %28 = arith.cmpi ne, %26, %27 : vector<8x128xi32>
    %c0_i32_8 = arith.constant 0 : i32
    %29 = vector.broadcast %c0_i32_8 : i32 to vector<8x128xi32>
    %30 = arith.cmpi slt, %26, %29 : vector<8x128xi32>
    %c0_i32_9 = arith.constant 0 : i32
    %31 = arith.cmpi slt, %24, %c0_i32_9 : i32
    %32 = vector.broadcast %31 : i1 to vector<8x128xi1>
    %33 = vector.broadcast %32 : vector<8x128xi1> to vector<8x128xi1>
    %34 = arith.xori %30, %33 : vector<8x128xi1>
    %35 = arith.andi %34, %28 : vector<8x128xi1>
    %36 = vector.broadcast %24 : i32 to vector<8x128xi32>
    %37 = arith.addi %26, %36 : vector<8x128xi32>
    %38 = arith.select %35, %37, %26 : vector<8x128xi1>, vector<8x128xi32>
    %c0_i32_10 = arith.constant 0 : i32
    %39 = vector.broadcast %c0_i32_10 : i32 to vector<8x128xi32>
    %40 = arith.cmpi eq, %38, %39 : vector<8x128xi32>
    %41 = vector.broadcast %20 : f32 to vector<8x128xf32>
    %42 = vector.broadcast %21 : f32 to vector<8x128xf32>
    %43 = arith.select %40, %41, %42 : vector<8x128xi1>, vector<8x128xf32>
    %44 = arith.mulf %1, %43 : vector<8x128xf32>
    %45 = tpu.bitcast %15 : vector<1x128xi32> -> vector<1x128xf32>
    %cst_11 = arith.constant 0.000000e+00 : f32
    %46 = vector.broadcast %cst_11 : f32 to vector<6x128xf32>
    %47 = tpu.concatenate %44, %19, %45, %46 in 0 : vector<8x128xf32>, vector<1x128xf32>, vector<1x128xf32>, vector<6x128xf32> -> vector<16x128xf32>
    %c0_12 = arith.constant 0 : index
    %c0_13 = arith.constant 0 : index
    %48 = vector.load %arg3[%c0_12, %c0_13] : memref<16x128xf32, #tpu.memory_space<vmem>>, vector<16x128xf32>
    tpu.vector_store %arg3[%c0_12, %c0_13], %47 {strides = array<i32>} : memref<16x128xf32, #tpu.memory_space<vmem>>, vector<16x128xf32>,
    return
  }
}

</mosaic_0001>

<llo_original>
// kernel: get_elements_from_curves.1
$region0: #{get_elements_from_curves.1}
  #allocation0 [shape = 'u32[]', space=smem, size = 0x4, offset = 0x4, fixed_abs, tag = 'smem constant byte address 0x4 - core index']
  #allocation1 [shape = 'u32[144,128]{1,0:T(1,128)}', space=vmem, size = 0x12000, scoped, tag = 'internal scratch']
  %s0 = inlined_call_operand.vmem [shape: f32[8,128], index: 0, kind: input, shape index: {}]
  %s1 = inlined_call_operand.vmem [shape: f32[8,128], index: 1, kind: input, shape index: {}]
  %s2 = inlined_call_operand.vmem [shape: f32[2], index: 2, kind: input, shape index: {}]
  %s3 = inlined_call_operand.hbm [shape: f32[16,128], index: 3, kind: output, shape index: {}]
  %s4 = sld [smem:[#allocation0]]
  $region26: #{get_elements_from_curves.1} parent=0
    _
  %s6 = ssub.s32 1, %s4
  %s7 = scalar_select 0, %s6, %s4
  $region1: #{get_elements_from_curves.1} parent=0
    #allocation2 [shape = 'u8[512]{0}', space=smem, size = 0x200, scoped, tag = 'input window, operand 2, single buffered']
    #allocation3 [shape = 's32[1]{0}', space=sflag, size = 0x4, scoped, tag = 'scoped memory for get_elements_from_curves.1']
    #allocation4 [shape = 's32[1]{0}', space=sflag, size = 0x4, scoped, tag = 'scoped memory for get_elements_from_curves.1']
    #allocation5 [shape = 'u8[8192]{0}', space=vmem, size = 0x2000, scoped, tag = 'output window, operand 0, single buffered']
    %8 = vsyncpa [#allocation4], 0
    %9 = vsyncpa [#allocation3], 0
    // Predicated region
    $region2: #{get_elements_from_curves.1} parent=1 // pred_check
      _
    $region3: #{get_elements_from_curves.1} parent=1 // pred_check_branch
      %11 = sbr.rel (0) target = $region5
    $region4: #{get_elements_from_curves.1} parent=1 // pred_region
      _
    $region5: #{get_elements_from_curves.1} parent=1 // pred_fallthru
      _
    // Predicated region
    $region6: #{get_elements_from_curves.1} parent=1 // pred_check
      _
    $region7: #{get_elements_from_curves.1} parent=1 // pred_check_branch
      %13 = sbr.rel (0) target = $region9
    $region8: #{get_elements_from_curves.1} parent=1 // pred_region
      _
    $region9: #{get_elements_from_curves.1} parent=1 // pred_fallthru
      _
    // Predicated region
    $region10: #{get_elements_from_curves.1} parent=1 // pred_check
      _
    $region11: #{get_elements_from_curves.1} parent=1 // pred_check_branch
      %15 = sbr.rel (0) target = $region13
    $region12: #{get_elements_from_curves.1} parent=1 // pred_region
      %s17 = ssub.s32 16, 16
      %18 = vsyncadd [#allocation4], %s17
      %s20 = sshll.u32 %s2, 4
      %s21 = int_to_ptr.vmem [resolvable:$true] %s20
      %23 = dma.vmem_to_smem %s21, 16, [#allocation2], [#allocation4]
    $region13: #{get_elements_from_curves.1} parent=1 // pred_fallthru
      _
    // Predicated region
    $region14: #{get_elements_from_curves.1} parent=1 // pred_check
      _
    $region15: #{get_elements_from_curves.1} parent=1 // pred_check_branch
      %25 = sbr.rel (0) target = $region17
    $region16: #{get_elements_from_curves.1} parent=1 // pred_region
      %26 = dma.done [#allocation4], 16
    $region17: #{get_elements_from_curves.1} parent=1 // pred_fallthru
      _
    %27 = sfence
    %v28 = vld [vmem:[%s0] sm:$0xff]
    %v29 = vld [vmem:[%s1] sm:$0xff]
    %v30 = vrot.slane %v28, 4
    %v31 = vmax.f32 %v28, %v30
    %v32 = vrot.slane %v31, 2
    %v33 = vmax.f32 %v31, %v32
    %v34 = vrot.slane %v33, 1
    %v35 = vmax.f32 %v33, %v34
    %v36 = vsub.f32 %v28, %v35
    %v37 = vmul.f32 %v36, 1.442695
    %v38 = vpow.pop %v37
    %v39 = vrot.slane %v38, 4
    %v40 = vadd.f32 %v38, %v39
    %v41 = vrot.slane %v40, 2
    %v42 = vadd.f32 %v40, %v41
    %v43 = vrot.slane %v42, 1
    %v44 = vadd.f32 %v42, %v43
    %v45 = vlaneseq
    %v46 = vshrl.u32 %v45, 7
    %vm47 = vcmp.eq.f32.partialorder %v28, %v35
    %v48 = vsel %vm47, %v46, 8
    %v49 = vrot.slane %v48, 4
    %vm50 = vcmp.lt.s32.totalorder %v48, %v49
    %v51 = vsel %vm50, %v48, %v49
    %v52 = vrot.slane %v51, 2
    %vm53 = vcmp.lt.s32.totalorder %v51, %v52
    %v54 = vsel %vm53, %v51, %v52
    %v55 = vrot.slane %v54, 1
    %vm56 = vcmp.lt.s32.totalorder %v54, %v55
    %v57 = vsel %vm56, %v54, %v55
    %v58 = vrcp.pop %v44
    %v59 = vmul.f32 %v38, %v58
    %v60 = vsub.f32 1.0, %v59
    %s61 = sld [smem:[#allocation2]]
    %s62 = sld [smem:[#allocation2 + $0x1]]
    %vm63 = vcmp.lt.s32.totalorder %v46, 0
    %v64 = vsub.s32 0, %v46
    %v65 = vsel %vm63, %v64, %v46
    %v66 = vshrl.u32 %v65, 1
    %v67 = vand.u32 %v65, 1
    %v68 = vsub.s32 0, %v67
    %v69 = vsel %vm63, %v68, %v67
    %vm70 = vcmp.ne.s32.totalorder %v69, 0
    %vm71 = vcmp.lt.s32.totalorder %v69, 0
    %vm72 = vmand %vm71, %vm70
    %v73 = vadd.s32 %v69, 2
    %v74 = vsel %vm72, %v73, %v69
    %vm75 = vcmp.eq.s32.totalorder %v74, 0
    %v76 = vstv %s61
    %v77 = vstv %s62
    %v78 = vsel %vm75, %v76, %v77
    %v79 = vmul.f32 %v29, %v78
    %v82 = vrot.slane %v60, 7
    %vm84 = vcmask 1040384
    %v85 = vsel %vm84, %v82, %v57
    %vm86 = vcmask 1041408
    %v87 = vsel %vm86, %v85, 0.0
    %88 = vst [vmem:[#allocation5] sm:$0xff] %v79
    %89 = vst [vmem:[#allocation5 + $0x8] sm:$0xff] %v87
    // Predicated region
    $region18: #{get_elements_from_curves.1} parent=1 // pred_check
      _
    $region19: #{get_elements_from_curves.1} parent=1 // pred_check_branch
      %91 = sbr.rel (0) target = $region21
    $region20: #{get_elements_from_curves.1} parent=1 // pred_region
      %s93 = ssub.s32 256, 256
      %94 = vsyncadd [#allocation3], %s93
      %s95 = sshll.u32 [#allocation5], 4
      %s96 = int_to_ptr.vmem [resolvable:$true] %s95
      %101 = dma.vmem_to_hbm [thread:$0]  %s96, 256, %s3, [#allocation3], 128, 128, 8
    $region21: #{get_elements_from_curves.1} parent=1 // pred_fallthru
      _
    // Predicated region
    $region22: #{get_elements_from_curves.1} parent=1 // pred_check
      _
    $region23: #{get_elements_from_curves.1} parent=1 // pred_check_branch
      %103 = sbr.rel (0) target = $region25
    $region24: #{get_elements_from_curves.1} parent=1 // pred_region
      %104 = dma.done [#allocation3], 256
    $region25: #{get_elements_from_curves.1} parent=1 // pred_fallthru
      _
    %105 = vsyncpa [#allocation3], 1
    %106 = vsyncpa [#allocation4], 1

</llo_original>
